<compile_context>
chip_gen: v6e
topology: v6e:2x2x1
jax: 0.10.0
libtpu: 0.0.40
codegen_flags: <defaults>
</compile_context>

<pallas_src>
import functools

import jax
import jax.numpy as jnp
from jax.experimental import pallas as pl
from jax.experimental.pallas import tpu as pltpu


def _round_up(x, m):
    return ((x + m - 1) // m) * m


def _make_kernel(smooth, C, TB, C_pad):
    smooth = float(smooth)
    two_s_over_c = 2.0 * smooth / C          # 2*s/C
    two_one_minus_s = 2.0 * (1.0 - smooth)   # 2*(1-s)

    def kernel(x_ref, w_ref, t_ref, loss_ref, neg_ref):
        x = x_ref[...]            # (TB, D)      f32 batch tile
        wn = w_ref[...]           # (D, C_pad)   f32, renormed, zero-padded cols
        t = t_ref[...]            # (TB, 1)      int32 targets (0 for padded rows)

        # 1/||x_row|| via rsqrt (EUP slot); eps avoids NaN for all-zero (padded) rows.
        inv_x = jax.lax.rsqrt(jnp.sum(x * x, axis=1, keepdims=True) + 1e-12)

        # cos_theta = clamp((x @ w_renorm) / ||x||, -1, 1)
        inner = jnp.dot(x, wn, preferred_element_type=jnp.float32)   # (TB, C_pad)
        cos = jnp.clip(inner * inv_x, -1.0, 1.0)                     # 0 on padded cols/rows

        # Algebraic MSE numerator (label^2 constant added in the wrapper):
        #   sum((cos - label)^2) = sum(cos^2) - 2*((1-s)*cos@tgt + (s/C)*sum(cos)) + const
        quad = cos * (cos - two_s_over_c)                 # cos^2 - (2s/C)*cos, one pass
        col_ids = jax.lax.broadcasted_iota(jnp.int32, (TB, C_pad), 1)
        cos_tgt = jnp.sum(jnp.where(col_ids == t, cos, 0.0))
        partial = jnp.sum(quad) - two_one_minus_s * cos_tgt
        loss_ref[...] = jnp.broadcast_to(partial, (1, 128))          # lane-dense row

        # -cos_theta[:, 0], emitted lane-dense as a (1, TB) row.  Column extraction +
        # transpose is done on the MXU (it has slack here): selector @ cos[:, :128]^T.
        sel = (jax.lax.broadcasted_iota(jnp.int32, (8, 128), 1) == 0).astype(jnp.float32)
        col0 = jax.lax.dot_general(
            sel, cos[:, 0:128], (((1,), (1,)), ((), ())),
            preferred_element_type=jnp.float32)           # (8, TB), all rows = cos[:, 0]
        neg_ref[...] = -col0[0:1, :]                      # (1, TB) full-vreg stores

    return kernel


@functools.partial(jax.jit, static_argnames=("smooth",))
def p2sgrad_loss(input_feat, weight, target, smooth=0.1):
    """input_feat (B, D) f32, weight (D, C) f32, target (B,) int.

    Returns (loss: scalar f32 [mean MSE vs smoothed one-hot], -cos_theta[:, 0])."""
    B, D = input_feat.shape
    Dw, C = weight.shape
    assert D == Dw

    x = input_feat.astype(jnp.float32)
    w = weight.astype(jnp.float32)

    # --- tiny prologue, hoisted out of the tiled kernel: per-column renorm of w ---
    # torch: weight.renorm(2, 1, 1e-5).mul(1e5)  (renorm eps 1e-7 matches aten)
    col_norm = jnp.sqrt(jnp.sum(w * w, axis=0, keepdims=True))          # (1, C)
    scale = jnp.where(col_norm > 1e-5, 1e-5 / (col_norm + 1e-7), 1.0) * 1e5
    wn = w * scale

    # pad classes to a multiple of 128 lanes (padded cols are zero -> cos == 0)
    C_pad = _round_up(C, 128)
    wn = jnp.pad(wn, ((0, 0), (0, C_pad - C)))

    # --- generation-aware sizing (v7x: 64 MiB VMEM/TC, v5e/v6e: 128 MiB) ---
    try:
        vmem_bytes = int(pltpu.get_tpu_info().vmem_capacity_bytes)
    except Exception:
        vmem_bytes = 64 * 1024 * 1024                     # conservative default
    vmem_limit = int(min(vmem_bytes * 3 // 4, 96 * 1024 * 1024))
    tb_cap = 1024 if vmem_bytes >= (96 << 20) else 512    # bigger tiles on 128-MiB parts

    def vmem_need(tb):
        return (2 * tb * D * 4            # x tile, double-buffered
                + 2 * tb * 128 * 4        # target (TB,1) block, lane-padded, x2 buffers
                + 2 * D * C_pad * 4       # resident weight (pipeline allocs 2 buffers;
                                          #  pipeline_mode=pl.Buffered(1) would halve it)
                + 4 * tb * C_pad * 4      # live (TB, C_pad) f32 temporaries / headroom
                + 2 * (tb + 128) * 4 * 8) # small outputs (neg row, loss row)

    # >= 2 grid steps whenever B > 8 so "parallel" can use both v7x TensorCores.
    TB = min(tb_cap, max(8, _round_up(pl.cdiv(B, 2), 8)))
    while TB > 8 and vmem_need(TB) > vmem_limit:
        TB = max(8, _round_up(TB // 2, 8))
    # TODO(synk): if 2*D*C_pad*4 alone exceeds the VMEM budget (very large class counts),
    # a C-tiling grid axis is required; not needed for the shapes exercised here.

    G = pl.cdiv(B, TB)
    B_pad = G * TB
    x_p = jnp.pad(x, ((0, B_pad - B), (0, 0)))                            # padded rows == 0
    t_p = jnp.pad(target.astype(jnp.int32), (0, B_pad - B)).reshape(B_pad, 1)

    partial, neg = pl.pallas_call(
        _make_kernel(smooth, C, TB, C_pad),
        grid=(G,),
        out_shape=(
            jax.ShapeDtypeStruct((G, 1, 128), jnp.float32),   # per-tile partial sums
            jax.ShapeDtypeStruct((G, 1, TB), jnp.float32),    # -cos_theta[:, 0], lane-dense
        ),
        in_specs=[
            pl.BlockSpec((TB, D), lambda i: (i, 0)),          # x tile (double-buffered)
            pl.BlockSpec((D, C_pad), lambda i: (0, 0)),       # renormed weight, resident
            pl.BlockSpec((TB, 1), lambda i: (i, 0)),          # target tile
        ],
        out_specs=(
            pl.BlockSpec((None, 1, 128), lambda i: (i, 0, 0)),
            pl.BlockSpec((None, 1, TB), lambda i: (i, 0, 0)),
        ),
        compiler_params=pltpu.CompilerParams(
            dimension_semantics=("parallel",),
            vmem_limit_bytes=vmem_limit,
        ),
    )(x_p, wn, t_p)

    # Closed-form sum(label^2) over the TRUE B x C labels.
    s = float(smooth)
    label_sq = B * ((1.0 - s) ** 2 + 2.0 * (1.0 - s) * s / C + (s * s) / C)
    loss = (jnp.sum(partial[:, 0, 0]) + label_sq) / (B * C)   # mean over the TRUE B*C
    neg_scores = neg.reshape(B_pad)[:B]
    return loss, neg_scores


if __name__ == "__main__":
    # Small shapes consistent with the module's usage example.
    B, D, C = 8, 32, 8
    key = jax.random.PRNGKey(0)
    k_x, k_w, k_t = jax.random.split(key, 3)

    # Deterministic parameter init (shape (in_dim, out_dim), uniform(-1, 1));
    # the renorm from __init__/forward is applied in the wrapper prologue.
    weight = jax.random.uniform(k_w, (D, C), jnp.float32, minval=-1.0, maxval=1.0)
    input_feat = jax.random.uniform(k_x, (B, D), jnp.float32, minval=-1.0, maxval=1.0)
    target = jax.random.randint(k_t, (B,), 0, C, dtype=jnp.int32)

    loss, neg_scores = p2sgrad_loss(input_feat, weight, target, smooth=0.1)
    jax.block_until_ready((loss, neg_scores))
    assert loss.shape == () and neg_scores.shape == (B,)

    # pure-JAX reference (torch-faithful forward), loose tolerance for matmul paths
    cn = jnp.sqrt(jnp.sum(weight * weight, axis=0, keepdims=True))
    wr = weight * (jnp.where(cn > 1e-5, 1e-5 / (cn + 1e-7), 1.0) * 1e5)
    xm = jnp.sqrt(jnp.sum(input_feat * input_feat, axis=1, keepdims=True))
    cos_ref = jnp.clip(
        jnp.dot(input_feat, wr, precision=jax.lax.Precision.HIGHEST) / xm, -1.0, 1.0)
    labels_ref = jax.nn.one_hot(target, C, dtype=jnp.float32) * (1.0 - 0.1) + 0.1 / C
    loss_ref = jnp.mean((cos_ref - labels_ref) ** 2)
    neg_ref = -cos_ref[:, 0]
    assert jnp.abs(loss - loss_ref) < 5e-4
    assert jnp.max(jnp.abs(neg_scores - neg_ref)) < 5e-4

    print("KERNEL_OK")
</pallas_src>

<mosaic_0001>
module attributes {stable_mosaic.version = 11 : i64} {
  func.func @kernel(%arg0: i32, %arg1: memref<8x32xf32, #tpu.memory_space<vmem>>, %arg2: memref<32x128xf32, #tpu.memory_space<vmem>>, %arg3: memref<8x1xi32, #tpu.memory_space<vmem>>, %arg4: memref<1x1x128xf32, #tpu.memory_space<vmem>>, %arg5: memref<1x1x8xf32, #tpu.memory_space<vmem>>) attributes {dimension_semantics = [#tpu.dimension_semantics<parallel>], iteration_bounds = array<i64: 1>, scalar_prefetch = 0 : i64, scratch_operands = 0 : i64, tpu.core_type = #tpu.core_type<tc>, window_params = [{transform_indices = @transform_0, window_bounds = array<i64: 8, 32>}, {pipeline_mode = #tpu.pipeline_mode<synchronous>, transform_indices = @transform_1, window_bounds = array<i64: 32, 128>}, {transform_indices = @transform_2, window_bounds = array<i64: 8, 1>}, {transform_indices = @transform_3, window_bounds = array<i64: 1, 1, 128>}, {transform_indices = @transform_4, window_bounds = array<i64: 1, 1, 8>}]} {
    %c0 = arith.constant 0 : index
    %c0_0 = arith.constant 0 : index
    %0 = vector.load %arg1[%c0, %c0_0] : memref<8x32xf32, #tpu.memory_space<vmem>>, vector<8x32xf32>
    %c0_1 = arith.constant 0 : index
    %c0_2 = arith.constant 0 : index
    %1 = vector.load %arg2[%c0_1, %c0_2] : memref<32x128xf32, #tpu.memory_space<vmem>>, vector<32x128xf32>
    %c0_3 = arith.constant 0 : index
    %c0_4 = arith.constant 0 : index
    %2 = vector.load %arg3[%c0_3, %c0_4] : memref<8x1xi32, #tpu.memory_space<vmem>>, vector<8x1xi32>
    %3 = arith.mulf %0, %0 : vector<8x32xf32>
    %cst = arith.constant dense<0.000000e+00> : vector<8xf32>
    %4 = vector.multi_reduction <add>, %3, %cst [1] : vector<8x32xf32> to vector<8xf32>
    %5 = vector.shape_cast %4 : vector<8xf32> to vector<8x1xf32>
    %cst_5 = arith.constant 9.99999996E-13 : f32
    %6 = vector.broadcast %cst_5 : f32 to vector<8x1xf32>
    %7 = arith.addf %5, %6 : vector<8x1xf32>
    %8 = math.rsqrt %7 : vector<8x1xf32>
    %cst_6 = arith.constant dense<0.000000e+00> : vector<8x128xf32>
    %9 = tpu.matmul %0, %1, %cst_6 {dimension_numbers = #tpu.dot_dimension_numbers<[1], [0], [0], [1], [0, 0, 1, 1], [], []>} : vector<8x32xf32>, vector<32x128xf32>, vector<8x128xf32> -> vector<8x128xf32>
    %10 = vector.broadcast %8 : vector<8x1xf32> to vector<8x128xf32>
    %11 = arith.mulf %9, %10 : vector<8x128xf32>
    %cst_7 = arith.constant -1.000000e+00 : f32
    %cst_8 = arith.constant 1.000000e+00 : f32
    %12 = vector.broadcast %cst_7 : f32 to vector<8x128xf32>
    %13 = arith.maximumf %12, %11 : vector<8x128xf32>
    %14 = vector.broadcast %cst_8 : f32 to vector<8x128xf32>
    %15 = arith.minimumf %14, %13 : vector<8x128xf32>
    %cst_9 = arith.constant 2.500000e-02 : f32
    %16 = vector.broadcast %cst_9 : f32 to vector<8x128xf32>
    %17 = arith.subf %15, %16 : vector<8x128xf32>
    %18 = arith.mulf %15, %17 : vector<8x128xf32>
    %19 = tpu.iota {dimensions = array<i32: 1>} : vector<8x128xi32>
    %20 = vector.broadcast %2 : vector<8x1xi32> to vector<8x128xi32>
    %21 = arith.cmpi eq, %19, %20 : vector<8x128xi32>
    %cst_10 = arith.constant 0.000000e+00 : f32
    %22 = vector.broadcast %cst_10 : f32 to vector<8x128xf32>
    %23 = arith.select %21, %15, %22 : vector<8x128xi1>, vector<8x128xf32>
    %24 = vector.shape_cast %23 : vector<8x128xf32> to vector<1x8x128xf32>
    %cst_11 = arith.constant dense<0.000000e+00> : vector<1xf32>
    %25 = vector.multi_reduction <add>, %24, %cst_11 [1, 2] : vector<1x8x128xf32> to vector<1xf32>
    %26 = vector.shape_cast %25 : vector<1xf32> to vector<1x1x1xf32>
    %27 = vector.extract %26[0, 0, 0] : f32 from vector<1x1x1xf32>
    %28 = vector.shape_cast %18 : vector<8x128xf32> to vector<1x8x128xf32>
    %cst_12 = arith.constant dense<0.000000e+00> : vector<1xf32>
    %29 = vector.multi_reduction <add>, %28, %cst_12 [1, 2] : vector<1x8x128xf32> to vector<1xf32>
    %30 = vector.shape_cast %29 : vector<1xf32> to vector<1x1x1xf32>
    %31 = vector.extract %30[0, 0, 0] : f32 from vector<1x1x1xf32>
    %cst_13 = arith.constant 1.800000e+00 : f32
    %32 = arith.mulf %cst_13, %27 : f32
    %33 = arith.subf %31, %32 : f32
    %34 = vector.broadcast %33 : f32 to vector<1x128xf32>
    %c0_14 = arith.constant 0 : index
    %c0_15 = arith.constant 0 : index
    %c0_16 = arith.constant 0 : index
    %35 = vector.load %arg4[%c0_14, %c0_15, %c0_16] : memref<1x1x128xf32, #tpu.memory_space<vmem>>, vector<1x1x128xf32>
    %36 = vector.shape_cast %35 : vector<1x1x128xf32> to vector<1x128xf32>
    %37 = vector.shape_cast %34 : vector<1x128xf32> to vector<1x1x128xf32>
    tpu.vector_store %arg4[%c0_14, %c0_15, %c0_16], %37 {strides = array<i32>} : memref<1x1x128xf32, #tpu.memory_space<vmem>>, vector<1x1x128xf32>,
    %38 = tpu.iota {dimensions = array<i32: 1>} : vector<8x128xi32>
    %c0_i32 = arith.constant 0 : i32
    %39 = vector.broadcast %c0_i32 : i32 to vector<8x128xi32>
    %40 = arith.cmpi eq, %38, %39 : vector<8x128xi32>
    %41 = arith.extui %40 : vector<8x128xi1> to vector<8x128xi32>
    %42 = arith.sitofp %41 : vector<8x128xi32> to vector<8x128xf32>
    %cst_17 = arith.constant dense<0.000000e+00> : vector<8x8xf32>
    %43 = tpu.matmul %42, %15, %cst_17 {dimension_numbers = #tpu.dot_dimension_numbers<[1], [1], [0], [0], [0, 0, 1, 0], [], []>} : vector<8x128xf32>, vector<8x128xf32>, vector<8x8xf32> -> vector<8x8xf32>
    %44 = vector.extract_strided_slice %43 {offsets = [0, 0], sizes = [1, 8], strides = [1, 1]} : vector<8x8xf32> to vector<1x8xf32>
    %cst_18 = arith.constant 0.000000e+00 : f32
    %45 = vector.broadcast %cst_18 : f32 to vector<1x8xf32>
    %46 = arith.subf %45, %44 : vector<1x8xf32>
    %c0_19 = arith.constant 0 : index
    %c0_20 = arith.constant 0 : index
    %c0_21 = arith.constant 0 : index
    %47 = vector.load %arg5[%c0_19, %c0_20, %c0_21] : memref<1x1x8xf32, #tpu.memory_space<vmem>>, vector<1x1x8xf32>
    %48 = vector.shape_cast %47 : vector<1x1x8xf32> to vector<1x8xf32>
    %49 = vector.shape_cast %46 : vector<1x8xf32> to vector<1x1x8xf32>
    tpu.vector_store %arg5[%c0_19, %c0_20, %c0_21], %49 {strides = array<i32>} : memref<1x1x8xf32, #tpu.memory_space<vmem>>, vector<1x1x8xf32>,
    return
  }
  func.func @transform_0(%arg0: i32) -> (i32, i32) {
    %c0_i32 = arith.constant 0 : i32
    %c0_i32_0 = arith.constant 0 : i32
    return %arg0, %c0_i32 : i32, i32
  }
  func.func @transform_1(%arg0: i32) -> (i32, i32) {
    %c0_i32 = arith.constant 0 : i32
    %c0_i32_0 = arith.constant 0 : i32
    %c0_i32_1 = arith.constant 0 : i32
    return %c0_i32, %c0_i32_0 : i32, i32
  }
  func.func @transform_2(%arg0: i32) -> (i32, i32) {
    %c0_i32 = arith.constant 0 : i32
    %c0_i32_0 = arith.constant 0 : i32
    return %arg0, %c0_i32 : i32, i32
  }
  func.func @transform_3(%arg0: i32) -> (i32, i32, i32) {
    %c0_i32 = arith.constant 0 : i32
    %c0_i32_0 = arith.constant 0 : i32
    %c0_i32_1 = arith.constant 0 : i32
    return %arg0, %c0_i32, %c0_i32_0 : i32, i32, i32
  }
  func.func @transform_4(%arg0: i32) -> (i32, i32, i32) {
    %c0_i32 = arith.constant 0 : i32
    %c0_i32_0 = arith.constant 0 : i32
    %c0_i32_1 = arith.constant 0 : i32
    return %arg0, %c0_i32, %c0_i32_0 : i32, i32, i32
  }
}

</mosaic_0001>

<llo_original>
// kernel: p2sgrad_loss.1
$region0: #{p2sgrad_loss.1}
  #allocation0 [shape = 'u32[]', space=smem, size = 0x4, offset = 0x4, fixed_abs, tag = 'smem constant byte address 0x4 - core index']
  #allocation1 [shape = 'u32[144,128]{1,0:T(1,128)}', space=vmem, size = 0x12000, scoped, tag = 'internal scratch']
  %s0 = inlined_call_operand.vmem [shape: f32[8,32], index: 0, kind: input, shape index: {}]
  %s1 = inlined_call_operand.vmem [shape: f32[32,128], index: 1, kind: input, shape index: {}]
  %s2 = inlined_call_operand.vmem [shape: s32[8,1], index: 2, kind: input, shape index: {}]
  %s3 = inlined_call_operand.vmem [shape: f32[1,1,128], index: 3, kind: output, shape index: {0}]
  %s4 = inlined_call_operand.hbm [shape: f32[1,1,8], index: 4, kind: output, shape index: {1}]
  %5 = xla_tuple %s3, %s4
  %s6 = sld [smem:[#allocation0]]
  $region30: #{p2sgrad_loss.1} parent=0
    _
  %s8 = ssub.s32 1, %s6
  %s9 = scalar_select 0, %s8, %s6
  $region1: #{p2sgrad_loss.1} parent=0
    #allocation2 [shape = 'u8[512]{0}', space=vmem, size = 0x400, scoped, tag = 'output window, operand 1, single buffered']
    #allocation3 [shape = 's32[1]{0}', space=sflag, size = 0x4, scoped, tag = 'scoped memory for p2sgrad_loss.1']
    %10 = vsyncpa [#allocation3], 0
    // Predicated region
    $region2: #{p2sgrad_loss.1} parent=1 // pred_check
      _
    $region3: #{p2sgrad_loss.1} parent=1 // pred_check_branch
      %12 = sbr.rel (0) target = $region5
    $region4: #{p2sgrad_loss.1} parent=1 // pred_region
      _
    $region5: #{p2sgrad_loss.1} parent=1 // pred_fallthru
      _
    // Predicated region
    $region6: #{p2sgrad_loss.1} parent=1 // pred_check
      _
    $region7: #{p2sgrad_loss.1} parent=1 // pred_check_branch
      %14 = sbr.rel (0) target = $region9
    $region8: #{p2sgrad_loss.1} parent=1 // pred_region
      _
    $region9: #{p2sgrad_loss.1} parent=1 // pred_fallthru
      _
    // Predicated region
    $region10: #{p2sgrad_loss.1} parent=1 // pred_check
      _
    $region11: #{p2sgrad_loss.1} parent=1 // pred_check_branch
      %16 = sbr.rel (0) target = $region13
    $region12: #{p2sgrad_loss.1} parent=1 // pred_region
      _
    $region13: #{p2sgrad_loss.1} parent=1 // pred_fallthru
      _
    %v17 = vld [vmem:[%s0] sm:$0xff]
    %v18 = vld [vmem:[%s1] sm:$0xff]
    %v19 = vld [vmem:[%s1 + $0x8] sm:$0xff]
    %v20 = vld [vmem:[%s1 + $0x10] sm:$0xff]
    %v21 = vld [vmem:[%s1 + $0x18] sm:$0xff]
    %v22 = vld [vmem:[%s2] sm:$0xff]
    %v23 = vmul.f32 %v17, %v17
    %vm24 = vcmask 261120
    %v25 = vsel %vm24, %v23, 0.0
    %26 = vadd.xlane.f32.xlu0 %v25
    %v27 = vpop.xlane.xlu0 %26
    %v28 = vadd.f32 %v27, 1e-12
    %v29 = vrsqrt.pop %v28
    %v31 = vsel %vm24, %v17, 0
    %33 = vmatprep.subr.mxu0 0.0
    %34 = vmatpush1.msra.mxu0 0.0
    %35 = vmatprep.subr.mxu0 0.0
    %36 = vmatpush1.msra.mxu0 0.0
    %37 = vmatprep.subr.mxu0 0.0
    %38 = vmatpush1.msra.mxu0 0.0
    %39 = vmatprep.subr.mxu0 0.0
    %40 = vmatpush1.msra.mxu0 0.0
    %41 = vmatprep.subr.mxu0 0.0
    %42 = vmatpush1.msra.mxu0 0.0
    %43 = vmatprep.subr.mxu0 0.0
    %44 = vmatpush1.msra.mxu0 0.0
    %45 = vmatprep.subr.mxu0 0.0
    %46 = vmatpush1.msra.mxu0 0.0
    %47 = vmatprep.subr.mxu0 0.0
    %48 = vmatpush1.msra.mxu0 0.0
    %49 = vmatprep.subr.mxu0 0.0
    %50 = vmatpush1.msra.mxu0 0.0
    %51 = vmatprep.subr.mxu0 0.0
    %52 = vmatpush1.msra.mxu0 0.0
    %53 = vmatprep.subr.mxu0 0.0
    %54 = vmatpush1.msra.mxu0 0.0
    %55 = vmatprep.subr.mxu0 0.0
    %56 = vmatpush1.msra.mxu0 0.0
    %57 = vmatprep.subr.mxu0 0.0
    %58 = vmatpush1.msra.mxu0 %v21
    %59 = vmatprep.subr.mxu0 0.0
    %60 = vmatpush1.msra.mxu0 %v20
    %61 = vmatprep.subr.mxu0 0.0
    %62 = vmatpush1.msra.mxu0 %v19
    %63 = vmatprep.subr.mxu0 0.0
    %64 = vmatpush1.msra.mxu0 %v18
    %65 = vmatprep.subr.mxu0 0.0
    %66 = vmatpush2.msra.mxu0 0.0
    %67 = vmatprep.subr.mxu0 0.0
    %68 = vmatpush2.msra.mxu0 0.0
    %69 = vmatprep.subr.mxu0 0.0
    %70 = vmatpush2.msra.mxu0 0.0
    %71 = vmatprep.subr.mxu0 0.0
    %72 = vmatpush2.msra.mxu0 0.0
    %73 = vmatprep.subr.mxu0 0.0
    %74 = vmatpush2.msra.mxu0 0.0
    %75 = vmatprep.subr.mxu0 0.0
    %76 = vmatpush2.msra.mxu0 0.0
    %77 = vmatprep.subr.mxu0 0.0
    %78 = vmatpush2.msra.mxu0 0.0
    %79 = vmatprep.subr.mxu0 0.0
    %80 = vmatpush2.msra.mxu0 0.0
    %81 = vmatprep.subr.mxu0 0.0
    %82 = vmatpush2.msra.mxu0 0.0
    %83 = vmatprep.subr.mxu0 0.0
    %84 = vmatpush2.msra.mxu0 0.0
    %85 = vmatprep.subr.mxu0 0.0
    %86 = vmatpush2.msra.mxu0 0.0
    %87 = vmatprep.subr.mxu0 0.0
    %88 = vmatpush2.msra.mxu0 0.0
    %89 = vmatprep.subr.mxu0 0.0
    %90 = vmatpush2.msra.mxu0 0.0
    %91 = vmatprep.subr.mxu0 0.0
    %92 = vmatpush2.msra.mxu0 0.0
    %93 = vmatprep.subr.mxu0 0.0
    %94 = vmatpush2.msra.mxu0 0.0
    %95 = vmatprep.subr.mxu0 0.0
    %96 = vmatpush2.msra.mxu0 0.0
    %97 = vmatprep.mubr.f32.mxu0 0.0
    %98 = vmatmul.mubr.f32.gmra.mxu0 %v31
    %v99 = vpop.f32.mrf.mxu0
    %v100 = vadd.f32 0.0, %v99
    %v101 = vpop.f32.mrf.mxu0
    %102 = vdwg.mxu0
    %v103 = vmul.f32 %v100, %v29
    %v104 = vmax.f32 %v103, -1.0
    %v105 = vmin.f32 %v104, 1.0
    %v106 = vsub.f32 %v105, 0.025
    %v107 = vmul.f32 %v105, %v106
    %v108 = vlaneseq
    %v109 = vand.u32 %v108, 127
    %110 = vset.pattern.permute.xlu0 0
    %111 = vperm.xlu0 %110, %v22
    %v112 = vpop.permute.xlu0 %111
    %vm113 = vcmp.eq.s32.totalorder %v109, %v112
    %v114 = vsel %vm113, %v105, 0.0
    %115 = vadd.xlane.f32.xlu0 %v114
    %v116 = vpop.xlane.xlu0 %115
    %v117 = vrot.slane %v116, 4
    %v118 = vadd.f32 %v116, %v117
    %v119 = vrot.slane %v118, 2
    %v120 = vadd.f32 %v118, %v119
    %v121 = vrot.slane %v120, 1
    %v122 = vadd.f32 %v120, %v121
    %s123 = vtos %v122
    %124 = vadd.xlane.f32.xlu0 %v107
    %v125 = vpop.xlane.xlu0 %124
    %v126 = vrot.slane %v125, 4
    %v127 = vadd.f32 %v125, %v126
    %v128 = vrot.slane %v127, 2
    %v129 = vadd.f32 %v127, %v128
    %v130 = vrot.slane %v129, 1
    %v131 = vadd.f32 %v129, %v130
    %s132 = vtos %v131
    %s133 = smul.f32 %s123, 1.8
    %s134 = ssub.f32 %s132, %s133
    %v135 = vstv %s134
    %136 = vst [vmem:[%s3] sm:$0x1] %v135
    %vm137 = vcmp.eq.s32.totalorder %v109, 0
    %v138 = vsel %vm137, 1, 0
    %v139 = vcvt.s32.f32 %v138
    %140 = vmatprep.subr.mxu0 0.0
    %141 = vmatpush1.xpose.msra.mxu0 0.0
    %142 = vmatprep.subr.mxu0 0.0
    %143 = vmatpush1.xpose.msra.mxu0 0.0
    %144 = vmatprep.subr.mxu0 0.0
    %145 = vmatpush1.xpose.msra.mxu0 0.0
    %146 = vmatprep.subr.mxu0 0.0
    %147 = vmatpush1.xpose.msra.mxu0 0.0
    %148 = vmatprep.subr.mxu0 0.0
    %149 = vmatpush1.xpose.msra.mxu0 0.0
    %150 = vmatprep.subr.mxu0 0.0
    %151 = vmatpush1.xpose.msra.mxu0 0.0
    %152 = vmatprep.subr.mxu0 0.0
    %153 = vmatpush1.xpose.msra.mxu0 0.0
    %154 = vmatprep.subr.mxu0 0.0
    %155 = vmatpush1.xpose.msra.mxu0 0.0
    %156 = vmatprep.subr.mxu0 0.0
    %157 = vmatpush1.xpose.msra.mxu0 0.0
    %158 = vmatprep.subr.mxu0 0.0
    %159 = vmatpush1.xpose.msra.mxu0 0.0
    %160 = vmatprep.subr.mxu0 0.0
    %161 = vmatpush1.xpose.msra.mxu0 0.0
    %162 = vmatprep.subr.mxu0 0.0
    %163 = vmatpush1.xpose.msra.mxu0 0.0
    %164 = vmatprep.subr.mxu0 0.0
    %165 = vmatpush1.xpose.msra.mxu0 0.0
    %166 = vmatprep.subr.mxu0 0.0
    %167 = vmatpush1.xpose.msra.mxu0 0.0
    %168 = vmatprep.subr.mxu0 0.0
    %169 = vmatpush1.xpose.msra.mxu0 0.0
    %170 = vmatprep.subr.mxu0 0.0
    %171 = vmatpush1.xpose.msra.mxu0 %v105
    %172 = vmatprep.subr.mxu0 0.0
    %173 = vmatpush2.xpose.msra.mxu0 0.0
    %174 = vmatprep.subr.mxu0 0.0
    %175 = vmatpush2.xpose.msra.mxu0 0.0
    %176 = vmatprep.subr.mxu0 0.0
    %177 = vmatpush2.xpose.msra.mxu0 0.0
    %178 = vmatprep.subr.mxu0 0.0
    %179 = vmatpush2.xpose.msra.mxu0 0.0
    %180 = vmatprep.subr.mxu0 0.0
    %181 = vmatpush2.xpose.msra.mxu0 0.0
    %182 = vmatprep.subr.mxu0 0.0
    %183 = vmatpush2.xpose.msra.mxu0 0.0
    %184 = vmatprep.subr.mxu0 0.0
    %185 = vmatpush2.xpose.msra.mxu0 0.0
    %186 = vmatprep.subr.mxu0 0.0
    %187 = vmatpush2.xpose.msra.mxu0 0.0
    %188 = vmatprep.subr.mxu0 0.0
    %189 = vmatpush2.xpose.msra.mxu0 0.0
    %190 = vmatprep.subr.mxu0 0.0
    %191 = vmatpush2.xpose.msra.mxu0 0.0
    %192 = vmatprep.subr.mxu0 0.0
    %193 = vmatpush2.xpose.msra.mxu0 0.0
    %194 = vmatprep.subr.mxu0 0.0
    %195 = vmatpush2.xpose.msra.mxu0 0.0
    %196 = vmatprep.subr.mxu0 0.0
    %197 = vmatpush2.xpose.msra.mxu0 0.0
    %198 = vmatprep.subr.mxu0 0.0
    %199 = vmatpush2.xpose.msra.mxu0 0.0
    %200 = vmatprep.subr.mxu0 0.0
    %201 = vmatpush2.xpose.msra.mxu0 0.0
    %202 = vmatprep.subr.mxu0 0.0
    %203 = vmatpush2.xpose.msra.mxu0 0.0
    %204 = vmatprep.mubr.f32.mxu0 0.0
    %205 = vmatmul.mubr.f32.gmra.mxu0 %v139
    %v206 = vpop.f32.mrf.mxu0
    %v207 = vadd.f32 0.0, %v206
    %v208 = vpop.f32.mrf.mxu0
    %209 = vdwg.mxu0
    %v210 = vsub.f32 0.0, %v207
    %vm211 = vcmask 57344
    %212 = vst.msk [vmem:[#allocation2] sm:$0x1] %vm211, %v210
    // Predicated region
    $region14: #{p2sgrad_loss.1} parent=1 // pred_check
      _
    $region15: #{p2sgrad_loss.1} parent=1 // pred_check_branch
      %214 = sbr.rel (0) target = $region17
    $region16: #{p2sgrad_loss.1} parent=1 // pred_region
      _
    $region17: #{p2sgrad_loss.1} parent=1 // pred_fallthru
      _
    // Predicated region
    $region18: #{p2sgrad_loss.1} parent=1 // pred_check
      _
    $region19: #{p2sgrad_loss.1} parent=1 // pred_check_branch
      %216 = sbr.rel (0) target = $region21
    $region20: #{p2sgrad_loss.1} parent=1 // pred_region
      %s218 = ssub.s32 16, 16
      %219 = vsyncadd [#allocation3], %s218
      %s221 = sshll.u32 [#allocation2], 4
      %s222 = int_to_ptr.vmem [resolvable:$true] %s221
      %224 = dma.vmem_to_hbm [thread:$0]  %s222, 16, %s4, [#allocation3]
    $region21: #{p2sgrad_loss.1} parent=1 // pred_fallthru
      _
    // Predicated region
    $region22: #{p2sgrad_loss.1} parent=1 // pred_check
      _
    $region23: #{p2sgrad_loss.1} parent=1 // pred_check_branch
      %226 = sbr.rel (0) target = $region25
    $region24: #{p2sgrad_loss.1} parent=1 // pred_region
      _
    $region25: #{p2sgrad_loss.1} parent=1 // pred_fallthru
      _
    // Predicated region
    $region26: #{p2sgrad_loss.1} parent=1 // pred_check
      _
    $region27: #{p2sgrad_loss.1} parent=1 // pred_check_branch
      %228 = sbr.rel (0) target = $region29
    $region28: #{p2sgrad_loss.1} parent=1 // pred_region
      %229 = dma.done [#allocation3], 16
    $region29: #{p2sgrad_loss.1} parent=1 // pred_fallthru
      _
    %230 = vsyncpa [#allocation3], 1

</llo_original>
